<compile_context>
chip_gen: v7x
topology: tpu7x:2x2x1
jax: 0.10.0
libtpu: 0.0.40
codegen_flags: <defaults>
</compile_context>

<pallas_src>
import functools

import jax
import jax.numpy as jnp
from jax.experimental import pallas as pl
from jax.experimental.pallas import tpu as pltpu


# ----------------------------------------------------------------------------
# Fused Pallas kernel: 3 MXU matmuls (fused layer1, block-diag layer2, B3)
# + bias + ReLU + channel concat.
# ----------------------------------------------------------------------------
def _inception4_kernel(x_ref, m1_ref, b1_ref, m2_ref, b2_ref, mb3_ref, bb3_ref,
                       o_ref, *, hf):
    # x_ref : (TN, H*Cin)      one tile of B*W rows, flattened (h, c) lanes (f32)
    # m1    : (H*Cin, 3*HF)    A1|B1|C1 band matrices, concatenated (bf16)
    # m2    : (3*HF, 3*HF)     A2/B2/C2 band matrices, block-diagonal   (bf16)
    # mb3   : (HF, HF)         B3 band matrix                           (bf16)
    # b*    : (1, lanes)       per-(h, cout) biases (f32)
    # o_ref : (TN, 3*HF)       concatenated branch outputs (torch.cat dim=1 order)
    x = x_ref[...].astype(jnp.bfloat16)

    # Layer 1 (A1, B1, C1 fused): one (TN,64)@(64,384) matmul.
    y1 = jnp.dot(x, m1_ref[...], preferred_element_type=jnp.float32)
    y1 = jnp.maximum(y1 + b1_ref[...], 0.0)

    # Layer 2 (A2, B2, C2 block-diagonal): one (TN,384)@(384,384) matmul.
    y2 = jnp.dot(y1.astype(jnp.bfloat16), m2_ref[...],
                 preferred_element_type=jnp.float32)
    y2 = jnp.maximum(y2 + b2_ref[...], 0.0)

    # Layer 3 (B3) only needs the middle HF lanes.
    b3 = jnp.dot(y2[:, hf:2 * hf].astype(jnp.bfloat16), mb3_ref[...],
                 preferred_element_type=jnp.float32)
    b3 = jnp.maximum(b3 + bb3_ref[...], 0.0)

    # 128-lane-aligned stores in torch.cat([A2, B3, C2], dim=1) order.
    o_ref[:, 0 * hf:1 * hf] = y2[:, 0 * hf:1 * hf]
    o_ref[:, 1 * hf:2 * hf] = b3
    o_ref[:, 2 * hf:3 * hf] = y2[:, 2 * hf:3 * hf]


# ----------------------------------------------------------------------------
# Weight folding: (K,1) conv (stride 1, pad (K-1)//2 along H) -> band matrix.
# ----------------------------------------------------------------------------
def _conv_weights_to_band_matrix(w, H):
    """(K, cin, cout) -> dense (H*cin, H*cout) matrix M with
       M[(h+d)*cin + ci, h*cout + co] = w[d + pad, ci, co] for 0 <= h+d < H.
       Zero padding is implicit (out-of-range bands simply absent)."""
    K, cin, cout = w.shape
    pad = (K - 1) // 2
    m = jnp.zeros((H * cin, H * cout), w.dtype)
    for kh in range(K):
        d = kh - pad
        sel = jnp.eye(H, H, k=-d, dtype=w.dtype)          # sel[h+d, h] = 1
        m = m + jnp.kron(sel, w[kh])
    return m


def pack_inception4_params(params, H, *, compute_dtype=jnp.bfloat16):
    """Fold conv weights into the 6 packed kernel operands. Call this ONCE per
    weight update (it is hoisted out of the jitted forward)."""
    def band(name):
        return _conv_weights_to_band_matrix(params[name]["w"], H)

    def bias(name):
        # Output lane layout is h*cout + co -> repeat bias vector H times.
        return jnp.tile(params[name]["b"], H).reshape(1, -1)

    m1 = jnp.concatenate([band("A1"), band("B1"), band("C1")], axis=1)
    b1 = jnp.concatenate([bias("A1"), bias("B1"), bias("C1")], axis=1)
    m2 = jax.scipy.linalg.block_diag(band("A2"), band("B2"), band("C2"))
    b2 = jnp.concatenate([bias("A2"), bias("B2"), bias("C2")], axis=1)
    mb3 = band("B3")
    bb3 = bias("B3")
    return {
        "m1": m1.astype(compute_dtype), "b1": b1.astype(jnp.float32),
        "m2": m2.astype(compute_dtype), "b2": b2.astype(jnp.float32),
        "mb3": mb3.astype(compute_dtype), "bb3": bb3.astype(jnp.float32),
    }


# ----------------------------------------------------------------------------
# Batch-tile selection (8-aligned, padded grid; >=2 steps for v7x megacore).
# ----------------------------------------------------------------------------
def _round_up(v, m):
    return (v + m - 1) // m * m


def _choose_tile_n(N, cap=2048):
    cap = max(8, _round_up(cap, 8))
    if N >= 2 * cap:
        return cap                                  # >= 2 full-sized grid steps
    if N >= 512:
        return _round_up(pl.cdiv(N, 2), 8)          # 2 steps -> both v7x TCs busy
    return _round_up(N, 8)                          # small problem: 1 step


# ----------------------------------------------------------------------------
# Forward wrapper: layout change, padding, pallas_call, layout change back.
# ----------------------------------------------------------------------------
def inception4_forward(packed, x_nchw, *, block_n_cap=2048):
    m1, b1 = packed["m1"], packed["b1"]
    m2, b2 = packed["m2"], packed["b2"]
    mb3, bb3 = packed["mb3"], packed["bb3"]

    B, Cin, H, W = x_nchw.shape
    HF = bb3.shape[1]                    # H * pool_features (128-lane aligned here)
    F = HF // H
    N = B * W

    # Single input layout change: NCHW -> (B, W, H, C) -> (N, H*C).
    x2 = jnp.transpose(x_nchw, (0, 3, 2, 1)).reshape(N, H * Cin)

    TN = _choose_tile_n(N, block_n_cap)
    grid = pl.cdiv(N, TN)
    n_pad = grid * TN
    if n_pad != N:
        x2 = jnp.pad(x2, ((0, n_pad - N), (0, 0)))   # padded rows are discarded

    kernel = functools.partial(_inception4_kernel, hf=HF)

    def wspec(a):
        # Grid-constant packed weights/biases (block == full array).
        return pl.BlockSpec(a.shape, lambda i: (0, 0))

    out2 = pl.pallas_call(
        kernel,
        # TODO(synk): switch to jnp.bfloat16 out_shape on v5e if consumers accept
        # bf16 (halves HBM write traffic where the kernel is memory-bound).
        out_shape=jax.ShapeDtypeStruct((n_pad, 3 * HF), jnp.float32),
        grid_spec=pltpu.PrefetchScalarGridSpec(
            num_scalar_prefetch=0,
            grid=(grid,),
            in_specs=[
                pl.BlockSpec((TN, H * Cin), lambda i: (i, 0)),
                wspec(m1), wspec(b1), wspec(m2), wspec(b2),
                wspec(mb3), wspec(bb3),
            ],
            out_specs=pl.BlockSpec((TN, 3 * HF), lambda i: (i, 0)),
        ),
        compiler_params=pltpu.CompilerParams(
            dimension_semantics=("parallel",),       # megacore across batch tiles
            vmem_limit_bytes=32 * 1024 * 1024,       # safe on v5e/v6e/v7x
        ),
    )(x2, m1, b1, m2, b2, mb3, bb3)

    # (N, 3*H*F) -> (B, W, 3, H, F) -> (B, 3F, H, W); channel order matches
    # torch.cat([A2, B3, C2], dim=1).
    out = out2[:N].reshape(B, W, 3, H, F)
    return jnp.transpose(out, (0, 2, 4, 3, 1)).reshape(B, 3 * F, H, W)


# ----------------------------------------------------------------------------
# Parameters (same conventions as the PyTorch module, BN disabled).
# ----------------------------------------------------------------------------
def _make_conv_params(key, k, cin, cout, scale=0.1):
    kw, kb = jax.random.split(key)
    w = scale * jax.random.normal(kw, (k, cin, cout), jnp.float32)
    b = scale * jax.random.normal(kb, (cout,), jnp.float32)
    return {"w": w, "b": b}


def init_inception4_params(key, in_channels, pool_features, filter_size):
    ks = jax.random.split(key, 8)
    fA, fB, fC = filter_size
    p = {}
    p["A1"] = _make_conv_params(ks[0], fA, in_channels, pool_features)
    p["A2"] = _make_conv_params(ks[1], fA, pool_features, pool_features)
    p["B1"] = _make_conv_params(ks[2], fB, in_channels, pool_features)
    p["B2"] = _make_conv_params(ks[3], fB, pool_features, pool_features)
    p["B3"] = _make_conv_params(ks[4], fB, pool_features, pool_features)
    # branchC_1 re-assigned in __init__: final version is kernel (21,1), pad 10.
    p["C1"] = _make_conv_params(ks[5], 21, in_channels, pool_features)
    # branchC_2 final version: kernel (filter_size[2], 1).
    p["C2"] = _make_conv_params(ks[6], fC, pool_features, pool_features)
    return p


# ----------------------------------------------------------------------------
# Pure-JAX reference (f32, HIGHEST precision) for the correctness check.
# ----------------------------------------------------------------------------
def _ref_conv_relu(x_nchw, layer):
    k = layer["w"].shape[0]
    pad = (k - 1) // 2
    w_oihw = jnp.transpose(layer["w"], (2, 1, 0))[:, :, :, None]   # OIHW
    y = jax.lax.conv_general_dilated(
        x_nchw, w_oihw, window_strides=(1, 1),
        padding=((pad, pad), (0, 0)),
        dimension_numbers=("NCHW", "OIHW", "NCHW"),
        precision=jax.lax.Precision.HIGHEST)
    return jax.nn.relu(y + layer["b"].reshape(1, -1, 1, 1))


def inception4_reference(params, x_nchw):
    a = _ref_conv_relu(_ref_conv_relu(x_nchw, params["A1"]), params["A2"])
    b = _ref_conv_relu(
        _ref_conv_relu(_ref_conv_relu(x_nchw, params["B1"]), params["B2"]),
        params["B3"])
    c = _ref_conv_relu(_ref_conv_relu(x_nchw, params["C1"]), params["C2"])
    return jnp.concatenate([a, b, c], axis=1)


if __name__ == "__main__":
    key = jax.random.PRNGKey(0)
    k_x, k_p = jax.random.split(key)

    B, in_channels, H, W = 2, 4, 16, 16
    pool_features = 8
    filter_size = (3, 5, 7)       # odd kernels -> padding (k-1)//2
    pool_size = 2                 # stored by the module but unused in forward

    x = jax.random.normal(k_x, (B, in_channels, H, W), jnp.float32)
    params = init_inception4_params(k_p, in_channels, pool_features, filter_size)

    # Band-matrix folding hoisted out of the jitted forward (once per weights).
    packed = pack_inception4_params(params, H)

    fwd = jax.jit(inception4_forward)
    out = jax.block_until_ready(fwd(packed, x))

    ref = jax.block_until_ready(inception4_reference(params, x))
    assert out.shape == (B, 3 * pool_features, H, W), out.shape
    max_err = float(jnp.max(jnp.abs(out - ref)))
    # bf16 MXU operands (f32 accumulation) vs the f32 HIGHEST-precision
    # reference: O(1e-3..1e-2) absolute deviation expected at these magnitudes.
    assert max_err < 5e-2, max_err

    print("KERNEL_OK")
</pallas_src>

<mosaic_0001>
module attributes {stable_mosaic.version = 11 : i64} {
  func.func @_inception4_kernel(%arg0: i32, %arg1: memref<32x64xf32, #tpu.memory_space<vmem>>, %arg2: memref<64x384xbf16, #tpu.memory_space<vmem>>, %arg3: memref<1x384xf32, #tpu.memory_space<vmem>>, %arg4: memref<384x384xbf16, #tpu.memory_space<vmem>>, %arg5: memref<1x384xf32, #tpu.memory_space<vmem>>, %arg6: memref<128x128xbf16, #tpu.memory_space<vmem>>, %arg7: memref<1x128xf32, #tpu.memory_space<vmem>>, %arg8: memref<32x384xf32, #tpu.memory_space<vmem>>) attributes {dimension_semantics = [#tpu.dimension_semantics<parallel>], iteration_bounds = array<i64: 1>, scalar_prefetch = 0 : i64, scratch_operands = 0 : i64, tpu.core_type = #tpu.core_type<tc>, window_params = [{transform_indices = @transform_0, window_bounds = array<i64: 32, 64>}, {pipeline_mode = #tpu.pipeline_mode<synchronous>, transform_indices = @transform_1, window_bounds = array<i64: 64, 384>}, {pipeline_mode = #tpu.pipeline_mode<synchronous>, transform_indices = @transform_2, window_bounds = array<i64: 1, 384>}, {pipeline_mode = #tpu.pipeline_mode<synchronous>, transform_indices = @transform_3, window_bounds = array<i64: 384, 384>}, {pipeline_mode = #tpu.pipeline_mode<synchronous>, transform_indices = @transform_4, window_bounds = array<i64: 1, 384>}, {pipeline_mode = #tpu.pipeline_mode<synchronous>, transform_indices = @transform_5, window_bounds = array<i64: 128, 128>}, {pipeline_mode = #tpu.pipeline_mode<synchronous>, transform_indices = @transform_6, window_bounds = array<i64: 1, 128>}, {transform_indices = @transform_7, window_bounds = array<i64: 32, 384>}]} {
    %c0 = arith.constant 0 : index
    %c0_0 = arith.constant 0 : index
    %0 = vector.load %arg1[%c0, %c0_0] : memref<32x64xf32, #tpu.memory_space<vmem>>, vector<32x64xf32>
    %1 = arith.truncf %0 : vector<32x64xf32> to vector<32x64xbf16>
    %c0_1 = arith.constant 0 : index
    %c0_2 = arith.constant 0 : index
    %2 = vector.load %arg2[%c0_1, %c0_2] : memref<64x384xbf16, #tpu.memory_space<vmem>>, vector<64x384xbf16>
    %cst = arith.constant dense<0.000000e+00> : vector<32x384xf32>
    %3 = tpu.matmul %1, %2, %cst {dimension_numbers = #tpu.dot_dimension_numbers<[1], [0], [0], [1], [0, 0, 1, 1], [], []>} : vector<32x64xbf16>, vector<64x384xbf16>, vector<32x384xf32> -> vector<32x384xf32>
    %c0_3 = arith.constant 0 : index
    %c0_4 = arith.constant 0 : index
    %4 = vector.load %arg3[%c0_3, %c0_4] : memref<1x384xf32, #tpu.memory_space<vmem>>, vector<1x384xf32>
    %5 = vector.broadcast %4 : vector<1x384xf32> to vector<32x384xf32>
    %6 = arith.addf %3, %5 : vector<32x384xf32>
    %cst_5 = arith.constant 0.000000e+00 : f32
    %7 = vector.broadcast %cst_5 : f32 to vector<32x384xf32>
    %8 = arith.maximumf %6, %7 : vector<32x384xf32>
    %9 = arith.truncf %8 : vector<32x384xf32> to vector<32x384xbf16>
    %c0_6 = arith.constant 0 : index
    %c0_7 = arith.constant 0 : index
    %10 = vector.load %arg4[%c0_6, %c0_7] : memref<384x384xbf16, #tpu.memory_space<vmem>>, vector<384x384xbf16>
    %cst_8 = arith.constant dense<0.000000e+00> : vector<32x384xf32>
    %11 = tpu.matmul %9, %10, %cst_8 {dimension_numbers = #tpu.dot_dimension_numbers<[1], [0], [0], [1], [0, 0, 1, 1], [], []>} : vector<32x384xbf16>, vector<384x384xbf16>, vector<32x384xf32> -> vector<32x384xf32>
    %c0_9 = arith.constant 0 : index
    %c0_10 = arith.constant 0 : index
    %12 = vector.load %arg5[%c0_9, %c0_10] : memref<1x384xf32, #tpu.memory_space<vmem>>, vector<1x384xf32>
    %13 = vector.broadcast %12 : vector<1x384xf32> to vector<32x384xf32>
    %14 = arith.addf %11, %13 : vector<32x384xf32>
    %cst_11 = arith.constant 0.000000e+00 : f32
    %15 = vector.broadcast %cst_11 : f32 to vector<32x384xf32>
    %16 = arith.maximumf %14, %15 : vector<32x384xf32>
    %17 = vector.extract_strided_slice %16 {offsets = [0, 128], sizes = [32, 128], strides = [1, 1]} : vector<32x384xf32> to vector<32x128xf32>
    %18 = arith.truncf %17 : vector<32x128xf32> to vector<32x128xbf16>
    %c0_12 = arith.constant 0 : index
    %c0_13 = arith.constant 0 : index
    %19 = vector.load %arg6[%c0_12, %c0_13] : memref<128x128xbf16, #tpu.memory_space<vmem>>, vector<128x128xbf16>
    %cst_14 = arith.constant dense<0.000000e+00> : vector<32x128xf32>
    %20 = tpu.matmul %18, %19, %cst_14 {dimension_numbers = #tpu.dot_dimension_numbers<[1], [0], [0], [1], [0, 0, 1, 1], [], []>} : vector<32x128xbf16>, vector<128x128xbf16>, vector<32x128xf32> -> vector<32x128xf32>
    %c0_15 = arith.constant 0 : index
    %c0_16 = arith.constant 0 : index
    %21 = vector.load %arg7[%c0_15, %c0_16] : memref<1x128xf32, #tpu.memory_space<vmem>>, vector<1x128xf32>
    %22 = vector.broadcast %21 : vector<1x128xf32> to vector<32x128xf32>
    %23 = arith.addf %20, %22 : vector<32x128xf32>
    %cst_17 = arith.constant 0.000000e+00 : f32
    %24 = vector.broadcast %cst_17 : f32 to vector<32x128xf32>
    %25 = arith.maximumf %23, %24 : vector<32x128xf32>
    %26 = vector.extract_strided_slice %16 {offsets = [0, 0], sizes = [32, 128], strides = [1, 1]} : vector<32x384xf32> to vector<32x128xf32>
    %c0_18 = arith.constant 0 : index
    %c0_19 = arith.constant 0 : index
    %27 = vector.load %arg8[%c0_18, %c0_19] : memref<32x384xf32, #tpu.memory_space<vmem>>, vector<32x128xf32>
    tpu.vector_store %arg8[%c0_18, %c0_19], %26 {strides = array<i32>} : memref<32x384xf32, #tpu.memory_space<vmem>>, vector<32x128xf32>,
    %c0_20 = arith.constant 0 : index
    %c128 = arith.constant 128 : index
    %28 = vector.load %arg8[%c0_20, %c128] : memref<32x384xf32, #tpu.memory_space<vmem>>, vector<32x128xf32>
    tpu.vector_store %arg8[%c0_20, %c128], %25 {strides = array<i32>} : memref<32x384xf32, #tpu.memory_space<vmem>>, vector<32x128xf32>,
    %29 = vector.extract_strided_slice %16 {offsets = [0, 256], sizes = [32, 128], strides = [1, 1]} : vector<32x384xf32> to vector<32x128xf32>
    %c0_21 = arith.constant 0 : index
    %c256 = arith.constant 256 : index
    %30 = vector.load %arg8[%c0_21, %c256] : memref<32x384xf32, #tpu.memory_space<vmem>>, vector<32x128xf32>
    tpu.vector_store %arg8[%c0_21, %c256], %29 {strides = array<i32>} : memref<32x384xf32, #tpu.memory_space<vmem>>, vector<32x128xf32>,
    return
  }
  func.func @transform_0(%arg0: i32) -> (i32, i32) {
    %c0_i32 = arith.constant 0 : i32
    %c0_i32_0 = arith.constant 0 : i32
    return %arg0, %c0_i32 : i32, i32
  }
  func.func @transform_1(%arg0: i32) -> (i32, i32) {
    %c0_i32 = arith.constant 0 : i32
    %c0_i32_0 = arith.constant 0 : i32
    %c0_i32_1 = arith.constant 0 : i32
    return %c0_i32, %c0_i32_0 : i32, i32
  }
  func.func @transform_2(%arg0: i32) -> (i32, i32) {
    %c0_i32 = arith.constant 0 : i32
    %c0_i32_0 = arith.constant 0 : i32
    %c0_i32_1 = arith.constant 0 : i32
    return %c0_i32, %c0_i32_0 : i32, i32
  }
  func.func @transform_3(%arg0: i32) -> (i32, i32) {
    %c0_i32 = arith.constant 0 : i32
    %c0_i32_0 = arith.constant 0 : i32
    %c0_i32_1 = arith.constant 0 : i32
    return %c0_i32, %c0_i32_0 : i32, i32
  }
  func.func @transform_4(%arg0: i32) -> (i32, i32) {
    %c0_i32 = arith.constant 0 : i32
    %c0_i32_0 = arith.constant 0 : i32
    %c0_i32_1 = arith.constant 0 : i32
    return %c0_i32, %c0_i32_0 : i32, i32
  }
  func.func @transform_5(%arg0: i32) -> (i32, i32) {
    %c0_i32 = arith.constant 0 : i32
    %c0_i32_0 = arith.constant 0 : i32
    %c0_i32_1 = arith.constant 0 : i32
    return %c0_i32, %c0_i32_0 : i32, i32
  }
  func.func @transform_6(%arg0: i32) -> (i32, i32) {
    %c0_i32 = arith.constant 0 : i32
    %c0_i32_0 = arith.constant 0 : i32
    %c0_i32_1 = arith.constant 0 : i32
    return %c0_i32, %c0_i32_0 : i32, i32
  }
  func.func @transform_7(%arg0: i32) -> (i32, i32) {
    %c0_i32 = arith.constant 0 : i32
    %c0_i32_0 = arith.constant 0 : i32
    return %arg0, %c0_i32 : i32, i32
  }
}

</mosaic_0001>

<llo_original>
// kernel: inception4_forward.1
$region0: #{inception4_forward.1}
  #allocation0 [shape = 'u32[]', space=smem, size = 0x4, offset = 0x4, fixed_abs, tag = 'smem constant byte address 0x4 - core index']
  #allocation1 [shape = 'u32[144,128]{1,0:T(1,128)}', space=vmem, size = 0x12000, scoped, tag = 'internal scratch']
  %s0 = inlined_call_operand.vmem [shape: f32[32,64], index: 0, kind: input, shape index: {}]
  %s1 = inlined_call_operand.vmem [shape: bf16[64,384], index: 1, kind: input, shape index: {}]
  %s2 = inlined_call_operand.vmem [shape: f32[1,384], index: 2, kind: input, shape index: {}]
  %s3 = inlined_call_operand.hbm [shape: bf16[384,384], index: 3, kind: input, shape index: {}]
  %s4 = inlined_call_operand.vmem [shape: f32[1,384], index: 4, kind: input, shape index: {}]
  %s5 = inlined_call_operand.vmem [shape: bf16[128,128], index: 5, kind: input, shape index: {}]
  %s6 = inlined_call_operand.vmem [shape: f32[1,128], index: 6, kind: input, shape index: {}]
  %s7 = inlined_call_operand.vmem [shape: f32[32,384], index: 7, kind: output, shape index: {}]
  %s8 = sld [smem:[#allocation0]]
  $region42: #{inception4_forward.1} parent=0
    _
  %s10 = ssub.s32 1, %s8
  %s11 = scalar_select 0, %s10, %s8
  $region1: #{inception4_forward.1} parent=0
    #allocation2 [shape = 'u8[294912]{0}', space=vmem, size = 0x48000, scoped, tag = 'input window, operand 3, single buffered']
    #allocation3 [shape = 's32[1]{0}', space=sflag, size = 0x4, scoped, tag = 'scoped memory for inception4_forward.1']
    %12 = vsyncpa [#allocation3], 0
    // Predicated region
    $region2: #{inception4_forward.1} parent=1 // pred_check
      _
    $region3: #{inception4_forward.1} parent=1 // pred_check_branch
      %14 = sbr.rel (0) target = $region5
    $region4: #{inception4_forward.1} parent=1 // pred_region
      _
    $region5: #{inception4_forward.1} parent=1 // pred_fallthru
      _
    // Predicated region
    $region6: #{inception4_forward.1} parent=1 // pred_check
      _
    $region7: #{inception4_forward.1} parent=1 // pred_check_branch
      %16 = sbr.rel (0) target = $region9
    $region8: #{inception4_forward.1} parent=1 // pred_region
      _
    $region9: #{inception4_forward.1} parent=1 // pred_fallthru
      _
    // Predicated region
    $region10: #{inception4_forward.1} parent=1 // pred_check
      _
    $region11: #{inception4_forward.1} parent=1 // pred_check_branch
      %18 = sbr.rel (0) target = $region13
    $region12: #{inception4_forward.1} parent=1 // pred_region
      _
    $region13: #{inception4_forward.1} parent=1 // pred_fallthru
      _
    // Predicated region
    $region14: #{inception4_forward.1} parent=1 // pred_check
      _
    $region15: #{inception4_forward.1} parent=1 // pred_check_branch
      %20 = sbr.rel (0) target = $region17
    $region16: #{inception4_forward.1} parent=1 // pred_region
      %s22 = ssub.s32 9216, 9216
      %23 = vsyncadd [#allocation3], %s22
      %s24 = sshll.u32 [#allocation2], 4
      %s25 = int_to_ptr.vmem [resolvable:$true] %s24
      %30 = dma.hbm_to_vmem [thread:$0]  %s3, 9216, %s25, [#allocation3], 192, 192, 12
    $region17: #{inception4_forward.1} parent=1 // pred_fallthru
      _
    // Predicated region
    $region18: #{inception4_forward.1} parent=1 // pred_check
      _
    $region19: #{inception4_forward.1} parent=1 // pred_check_branch
      %32 = sbr.rel (0) target = $region21
    $region20: #{inception4_forward.1} parent=1 // pred_region
      _
    $region21: #{inception4_forward.1} parent=1 // pred_fallthru
      _
    // Predicated region
    $region22: #{inception4_forward.1} parent=1 // pred_check
      _
    $region23: #{inception4_forward.1} parent=1 // pred_check_branch
      %34 = sbr.rel (0) target = $region25
    $region24: #{inception4_forward.1} parent=1 // pred_region
      _
    $region25: #{inception4_forward.1} parent=1 // pred_fallthru
      _
    // Predicated region
    $region26: #{inception4_forward.1} parent=1 // pred_check
      _
    $region27: #{inception4_forward.1} parent=1 // pred_check_branch
      %36 = sbr.rel (0) target = $region29
    $region28: #{inception4_forward.1} parent=1 // pred_region
      _
    $region29: #{inception4_forward.1} parent=1 // pred_fallthru
      _
    // Predicated region
    $region30: #{inception4_forward.1} parent=1 // pred_check
      _
    $region31: #{inception4_forward.1} parent=1 // pred_check_branch
      %38 = sbr.rel (0) target = $region33
    $region32: #{inception4_forward.1} parent=1 // pred_region
      %39 = dma.done [#allocation3], 9216
    $region33: #{inception4_forward.1} parent=1 // pred_fallthru
      _
    %v41 = vld [vmem:[%s0] sm:$0xff]
    %v42 = vld [vmem:[%s0 + $0x8] sm:$0xff]
    %v43 = vld [vmem:[%s0 + $0x10] sm:$0xff]
    %v44 = vld [vmem:[%s0 + $0x18] sm:$0xff]
    %v45 = vpack.c.bf16 %v42, %v41
    %v46 = vpack.c.bf16 %v44, %v43
    %v47 = vld [vmem:[%s1] sm:$0xff]
    %v48 = vld [vmem:[%s1 + $0x8] sm:$0xf]
    %v49 = vld [vmem:[%s1 + $0xc] sm:$0xff]
    %v50 = vld [vmem:[%s1 + $0x14] sm:$0xf]
    %v51 = vld [vmem:[%s1 + $0x18] sm:$0xff]
    %v52 = vld [vmem:[%s1 + $0x20] sm:$0xf]
    %v53 = vld [vmem:[%s1 + $0x24] sm:$0xff]
    %v54 = vld [vmem:[%s1 + $0x2c] sm:$0xf]
    %v55 = vld [vmem:[%s1 + $0x30] sm:$0xff]
    %v56 = vld [vmem:[%s1 + $0x38] sm:$0xf]
    %v57 = vld [vmem:[%s1 + $0x3c] sm:$0xff]
    %v58 = vld [vmem:[%s1 + $0x44] sm:$0xf]
    %v59 = vld [vmem:[%s1 + $0x48] sm:$0xff]
    %v60 = vld [vmem:[%s1 + $0x50] sm:$0xf]
    %v61 = vld [vmem:[%s1 + $0x54] sm:$0xff]
    %v62 = vld [vmem:[%s1 + $0x5c] sm:$0xf]
    %v63 = vld [vmem:[%s2] sm:$0x7]
    %v65 = vlaneseq
    %v66 = vshrl.u32 %v65, 7
    %v67 = vsub.s32 0, %v66
    %v68 = vrot.slane %v63, %v67
    %v69 = vlaneseq
    %v70 = vshrl.u32 %v69, 7
    %v71 = vsub.s32 1, %v70
    %v72 = vrot.slane %v63, %v71
    %v73 = vlaneseq
    %v74 = vshrl.u32 %v73, 7
    %v75 = vsub.s32 2, %v74
    %v76 = vrot.slane %v63, %v75
    %v96 = vunpack.c.l.b16 %v47
    %v97 = vunpack.c.h.b16 %v47
    %v98 = vunpack.c.l.b16 %v48
    %v99 = vunpack.c.l.b16 %v49
    %v100 = vunpack.c.h.b16 %v49
    %v101 = vunpack.c.l.b16 %v50
    %v102 = vunpack.c.l.b16 %v51
    %v103 = vunpack.c.h.b16 %v51
    %v104 = vunpack.c.l.b16 %v52
    %v105 = vunpack.c.l.b16 %v53
    %v106 = vunpack.c.h.b16 %v53
    %v107 = vunpack.c.l.b16 %v54
    %v108 = vunpack.c.l.b16 %v55
    %v109 = vunpack.c.h.b16 %v55
    %v110 = vunpack.c.l.b16 %v56
    %v111 = vunpack.c.l.b16 %v57
    %v112 = vunpack.c.h.b16 %v57
    %v113 = vunpack.c.l.b16 %v58
    %v114 = vunpack.c.l.b16 %v59
    %v115 = vunpack.c.h.b16 %v59
    %v116 = vunpack.c.l.b16 %v60
    %v117 = vunpack.c.l.b16 %v61
    %v118 = vunpack.c.h.b16 %v61
    %v119 = vunpack.c.l.b16 %v62
    %v120 = vpack.c.b16 %v99, %v96
    %v121 = vpack.c.b16 %v100, %v97
    %v122 = vpack.c.b16 %v101, %v98
    %v123 = vpack.c.b16 %v105, %v102
    %v124 = vpack.c.b16 %v106, %v103
    %v125 = vpack.c.b16 %v107, %v104
    %v126 = vpack.c.b16 %v111, %v108
    %v127 = vpack.c.b16 %v112, %v109
    %v128 = vpack.c.b16 %v113, %v110
    %v129 = vpack.c.b16 %v117, %v114
    %v130 = vpack.c.b16 %v118, %v115
    %v131 = vpack.c.b16 %v119, %v116
    %vm144 = vcmask 523264
    %v146 = vsel %vm144, %v45, 0
    %v149 = vsel %vm144, %v46, 0
    %151 = vmatprep.subr.bf16.mxu0 %v121
    %152 = vmatpush1.bf16.msra.mxu0 %v120
    %153 = vmatprep.subr.bf16.mxu0 %v124
    %154 = vmatpush1.bf16.msra.mxu0 %v123
    %155 = vmatprep.subr.bf16.mxu0 %v127
    %156 = vmatpush1.bf16.msra.mxu0 %v126
    %157 = vmatprep.subr.bf16.mxu0 %v130
    %158 = vmatpush1.bf16.msra.mxu0 %v129
    %159 = vmatprep.subr.bf16.mxu0 0
    %160 = vmatpush1.bf16.msra.mxu0 0
    %161 = vmatprep.subr.bf16.mxu0 0
    %162 = vmatpush1.bf16.msra.mxu0 0
    %163 = vmatprep.subr.bf16.mxu0 0
    %164 = vmatpush1.bf16.msra.mxu0 0
    %165 = vmatprep.subr.bf16.mxu0 0
    %166 = vmatpush1.bf16.msra.mxu0 0
    %167 = vmatprep.subr.bf16.mxu0 0
    %168 = vmatpush1.bf16.msra.mxu0 0
    %169 = vmatprep.subr.bf16.mxu0 0
    %170 = vmatpush1.bf16.msra.mxu0 0
    %171 = vmatprep.subr.bf16.mxu0 0
    %172 = vmatpush1.bf16.msra.mxu0 0
    %173 = vmatprep.subr.bf16.mxu0 0
    %174 = vmatpush1.bf16.msra.mxu0 0
    %175 = vmatprep.subr.bf16.mxu0 0
    %176 = vmatpush1.bf16.msra.mxu0 0
    %177 = vmatprep.subr.bf16.mxu0 0
    %178 = vmatpush1.bf16.msra.mxu0 0
    %179 = vmatprep.subr.bf16.mxu0 0
    %180 = vmatpush1.bf16.msra.mxu0 0
    %181 = vmatprep.subr.bf16.mxu0 0
    %182 = vmatpush1.bf16.msra.mxu0 0
    %183 = vmatprep.mubr.bf16.mxu0 0
    %184 = vmatmul.mubr.bf16.gmra.mrb[0].mxu0 %v146
    %v185 = vpop.f32.mrb[0].mxu0
    %v186 = vadd.f32 %v68, %v185
    %v187 = vpop.f32.mrb[0].mxu0
    %v188 = vadd.f32 %v72, %v187
    %v189 = vpop.f32.mrb[0].mxu0
    %v190 = vadd.f32 %v68, %v189
    %v191 = vpop.f32.mrb[0].mxu0
    %v192 = vadd.f32 %v72, %v191
    %193 = vmatprep.mubr.bf16.mxu0 0
    %194 = vmatmul.mubr.bf16.gmra.mrb[0].mxu0 %v149
    %v195 = vpop.f32.mrb[0].mxu0
    %v196 = vadd.f32 %v68, %v195
    %v197 = vpop.f32.mrb[0].mxu0
    %v198 = vadd.f32 %v72, %v197
    %v199 = vpop.f32.mrb[0].mxu0
    %v200 = vadd.f32 %v68, %v199
    %v201 = vpop.f32.mrb[0].mxu0
    %v202 = vadd.f32 %v72, %v201
    %203 = vdwg.mxu0
    %204 = vmatprep.subr.bf16.mxu0 0
    %205 = vmatpush1.bf16.msra.mxu0 %v122
    %206 = vmatprep.subr.bf16.mxu0 0
    %207 = vmatpush1.bf16.msra.mxu0 %v125
    %208 = vmatprep.subr.bf16.mxu0 0
    %209 = vmatpush1.bf16.msra.mxu0 %v128
    %210 = vmatprep.subr.bf16.mxu0 0
    %211 = vmatpush1.bf16.msra.mxu0 %v131
    %212 = vmatprep.subr.bf16.mxu0 0
    %213 = vmatpush1.bf16.msra.mxu0 0
    %214 = vmatprep.subr.bf16.mxu0 0
    %215 = vmatpush1.bf16.msra.mxu0 0
    %216 = vmatprep.subr.bf16.mxu0 0
    %217 = vmatpush1.bf16.msra.mxu0 0
    %218 = vmatprep.subr.bf16.mxu0 0
    %219 = vmatpush1.bf16.msra.mxu0 0
    %220 = vmatprep.subr.bf16.mxu0 0
    %221 = vmatpush1.bf16.msra.mxu0 0
    %222 = vmatprep.subr.bf16.mxu0 0
    %223 = vmatpush1.bf16.msra.mxu0 0
    %224 = vmatprep.subr.bf16.mxu0 0
    %225 = vmatpush1.bf16.msra.mxu0 0
    %226 = vmatprep.subr.bf16.mxu0 0
    %227 = vmatpush1.bf16.msra.mxu0 0
    %228 = vmatprep.subr.bf16.mxu0 0
    %229 = vmatpush1.bf16.msra.mxu0 0
    %230 = vmatprep.subr.bf16.mxu0 0
    %231 = vmatpush1.bf16.msra.mxu0 0
    %232 = vmatprep.subr.bf16.mxu0 0
    %233 = vmatpush1.bf16.msra.mxu0 0
    %234 = vmatprep.subr.bf16.mxu0 0
    %235 = vmatpush1.bf16.msra.mxu0 0
    %236 = vmatprep.mubr.bf16.mxu0 0
    %237 = vmatmul.mubr.bf16.gmra.mrb[0].mxu0 %v146
    %v238 = vpop.f32.mrb[0].mxu0
    %v239 = vadd.f32 %v76, %v238
    %v240 = vpop.f32.mrb[0].mxu0
    %v241 = vpop.f32.mrb[0].mxu0
    %v242 = vadd.f32 %v76, %v241
    %v243 = vpop.f32.mrb[0].mxu0
    %244 = vmatprep.mubr.bf16.mxu0 0
    %245 = vmatmul.mubr.bf16.gmra.mrb[0].mxu0 %v149
    %v246 = vpop.f32.mrb[0].mxu0
    %v247 = vadd.f32 %v76, %v246
    %v248 = vpop.f32.mrb[0].mxu0
    %v249 = vpop.f32.mrb[0].mxu0
    %v250 = vadd.f32 %v76, %v249
    %v251 = vpop.f32.mrb[0].mxu0
    %252 = vdwg.mxu0
    %v253 = vmax.f32 %v186, 0.0
    %v254 = vmax.f32 %v188, 0.0
    %v255 = vmax.f32 %v239, 0.0
    %v256 = vmax.f32 %v190, 0.0
    %v257 = vmax.f32 %v192, 0.0
    %v258 = vmax.f32 %v242, 0.0
    %v259 = vmax.f32 %v196, 0.0
    %v260 = vmax.f32 %v198, 0.0
    %v261 = vmax.f32 %v247, 0.0
    %v262 = vmax.f32 %v200, 0.0
    %v263 = vmax.f32 %v202, 0.0
    %v264 = vmax.f32 %v250, 0.0
    %v265 = vpack.c.bf16 %v256, %v253
    %v266 = vpack.c.bf16 %v257, %v254
    %v267 = vpack.c.bf16 %v258, %v255
    %v268 = vpack.c.bf16 %v262, %v259
    %v269 = vpack.c.bf16 %v263, %v260
    %v270 = vpack.c.bf16 %v264, %v261
    %v271 = vld [vmem:[#allocation2] sm:$0xff]
    %v272 = vld [vmem:[#allocation2 + $0x8] sm:$0xf]
    %v273 = vld [vmem:[#allocation2 + $0xc] sm:$0xff]
    %v274 = vld [vmem:[#allocation2 + $0x14] sm:$0xf]
    %v275 = vld [vmem:[#allocation2 + $0x18] sm:$0xff]
    %v276 = vld [vmem:[#allocation2 + $0x20] sm:$0xf]
    %v277 = vld [vmem:[#allocation2 + $0x24] sm:$0xff]
    %v278 = vld [vmem:[#allocation2 + $0x2c] sm:$0xf]
    %v279 = vld [vmem:[#allocation2 + $0x30] sm:$0xff]
    %v280 = vld [vmem:[#allocation2 + $0x38] sm:$0xf]
    %v281 = vld [vmem:[#allocation2 + $0x3c] sm:$0xff]
    %v282 = vld [vmem:[#allocation2 + $0x44] sm:$0xf]
    %v283 = vld [vmem:[#allocation2 + $0x48] sm:$0xff]
    %v284 = vld [vmem:[#allocation2 + $0x50] sm:$0xf]
    %v285 = vld [vmem:[#allocation2 + $0x54] sm:$0xff]
    %v286 = vld [vmem:[#allocation2 + $0x5c] sm:$0xf]
    %v287 = vld [vmem:[#allocation2 + $0x60] sm:$0xff]
    %v288 = vld [vmem:[#allocation2 + $0x68] sm:$0xf]
    %v289 = vld [vmem:[#allocation2 + $0x6c] sm:$0xff]
    %v290 = vld [vmem:[#allocation2 + $0x74] sm:$0xf]
    %v291 = vld [vmem:[#allocation2 + $0x78] sm:$0xff]
    %v292 = vld [vmem:[#allocation2 + $0x80] sm:$0xf]
    %v293 = vld [vmem:[#allocation2 + $0x84] sm:$0xff]
    %v294 = vld [vmem:[#allocation2 + $0x8c] sm:$0xf]
    %v295 = vld [vmem:[#allocation2 + $0x90] sm:$0xff]
    %v296 = vld [vmem:[#allocation2 + $0x98] sm:$0xf]
    %v297 = vld [vmem:[#allocation2 + $0x9c] sm:$0xff]
    %v298 = vld [vmem:[#allocation2 + $0xa4] sm:$0xf]
    %v299 = vld [vmem:[#allocation2 + $0xa8] sm:$0xff]
    %v300 = vld [vmem:[#allocation2 + $0xb0] sm:$0xf]
    %v301 = vld [vmem:[#allocation2 + $0xb4] sm:$0xff]
    %v302 = vld [vmem:[#allocation2 + $0xbc] sm:$0xf]
    %v303 = vld [vmem:[#allocation2 + $0xc0] sm:$0xff]
    %v304 = vld [vmem:[#allocation2 + $0xc8] sm:$0xf]
    %v305 = vld [vmem:[#allocation2 + $0xcc] sm:$0xff]
    %v306 = vld [vmem:[#allocation2 + $0xd4] sm:$0xf]
    %v307 = vld [vmem:[#allocation2 + $0xd8] sm:$0xff]
    %v308 = vld [vmem:[#allocation2 + $0xe0] sm:$0xf]
    %v309 = vld [vmem:[#allocation2 + $0xe4] sm:$0xff]
    %v310 = vld [vmem:[#allocation2 + $0xec] sm:$0xf]
    %v311 = vld [vmem:[#allocation2 + $0xf0] sm:$0xff]
    %v312 = vld [vmem:[#allocation2 + $0xf8] sm:$0xf]
    %v313 = vld [vmem:[#allocation2 + $0xfc] sm:$0xff]
    %v314 = vld [vmem:[#allocation2 + $0x104] sm:$0xf]
    %v315 = vld [vmem:[#allocation2 + $0x108] sm:$0xff]
    %v316 = vld [vmem:[#allocation2 + $0x110] sm:$0xf]
    %v317 = vld [vmem:[#allocation2 + $0x114] sm:$0xff]
    %v318 = vld [vmem:[#allocation2 + $0x11c] sm:$0xf]
    %v319 = vld [vmem:[#allocation2 + $0x120] sm:$0xff]
    %v320 = vld [vmem:[#allocation2 + $0x128] sm:$0xf]
    %v321 = vld [vmem:[#allocation2 + $0x12c] sm:$0xff]
    %v322 = vld [vmem:[#allocation2 + $0x134] sm:$0xf]
    %v323 = vld [vmem:[#allocation2 + $0x138] sm:$0xff]
    %v324 = vld [vmem:[#allocation2 + $0x140] sm:$0xf]
    %v325 = vld [vmem:[#allocation2 + $0x144] sm:$0xff]
    %v326 = vld [vmem:[#allocation2 + $0x14c] sm:$0xf]
    %v327 = vld [vmem:[#allocation2 + $0x150] sm:$0xff]
    %v328 = vld [vmem:[#allocation2 + $0x158] sm:$0xf]
    %v329 = vld [vmem:[#allocation2 + $0x15c] sm:$0xff]
    %v330 = vld [vmem:[#allocation2 + $0x164] sm:$0xf]
    %v331 = vld [vmem:[#allocation2 + $0x168] sm:$0xff]
    %v332 = vld [vmem:[#allocation2 + $0x170] sm:$0xf]
    %v333 = vld [vmem:[#allocation2 + $0x174] sm:$0xff]
    %v334 = vld [vmem:[#allocation2 + $0x17c] sm:$0xf]
    %v335 = vld [vmem:[#allocation2 + $0x180] sm:$0xff]
    %v336 = vld [vmem:[#allocation2 + $0x188] sm:$0xf]
    %v337 = vld [vmem:[#allocation2 + $0x18c] sm:$0xff]
    %v338 = vld [vmem:[#allocation2 + $0x194] sm:$0xf]
    %v339 = vld [vmem:[#allocation2 + $0x198] sm:$0xff]
    %v340 = vld [vmem:[#allocation2 + $0x1a0] sm:$0xf]
    %v341 = vld [vmem:[#allocation2 + $0x1a4] sm:$0xff]
    %v342 = vld [vmem:[#allocation2 + $0x1ac] sm:$0xf]
    %v343 = vld [vmem:[#allocation2 + $0x1b0] sm:$0xff]
    %v344 = vld [vmem:[#allocation2 + $0x1b8] sm:$0xf]
    %v345 = vld [vmem:[#allocation2 + $0x1bc] sm:$0xff]
    %v346 = vld [vmem:[#allocation2 + $0x1c4] sm:$0xf]
    %v347 = vld [vmem:[#allocation2 + $0x1c8] sm:$0xff]
    %v348 = vld [vmem:[#allocation2 + $0x1d0] sm:$0xf]
    %v349 = vld [vmem:[#allocation2 + $0x1d4] sm:$0xff]
    %v350 = vld [vmem:[#allocation2 + $0x1dc] sm:$0xf]
    %v351 = vld [vmem:[#allocation2 + $0x1e0] sm:$0xff]
    %v352 = vld [vmem:[#allocation2 + $0x1e8] sm:$0xf]
    %v353 = vld [vmem:[#allocation2 + $0x1ec] sm:$0xff]
    %v354 = vld [vmem:[#allocation2 + $0x1f4] sm:$0xf]
    %v355 = vld [vmem:[#allocation2 + $0x1f8] sm:$0xff]
    %v356 = vld [vmem:[#allocation2 + $0x200] sm:$0xf]
    %v357 = vld [vmem:[#allocation2 + $0x204] sm:$0xff]
    %v358 = vld [vmem:[#allocation2 + $0x20c] sm:$0xf]
    %v359 = vld [vmem:[#allocation2 + $0x210] sm:$0xff]
    %v360 = vld [vmem:[#allocation2 + $0x218] sm:$0xf]
    %v361 = vld [vmem:[#allocation2 + $0x21c] sm:$0xff]
    %v362 = vld [vmem:[#allocation2 + $0x224] sm:$0xf]
    %v363 = vld [vmem:[#allocation2 + $0x228] sm:$0xff]
    %v364 = vld [vmem:[#allocation2 + $0x230] sm:$0xf]
    %v365 = vld [vmem:[#allocation2 + $0x234] sm:$0xff]
    %v366 = vld [vmem:[#allocation2 + $0x23c] sm:$0xf]
    %v367 = vld [vmem:[%s4] sm:$0x7]
    %v369 = vlaneseq
    %v370 = vshrl.u32 %v369, 7
    %v371 = vsub.s32 0, %v370
    %v372 = vrot.slane %v367, %v371
    %v373 = vlaneseq
    %v374 = vshrl.u32 %v373, 7
    %v375 = vsub.s32 1, %v374
    %v376 = vrot.slane %v367, %v375
    %v377 = vlaneseq
    %v378 = vshrl.u32 %v377, 7
    %v379 = vsub.s32 2, %v378
    %v380 = vrot.slane %v367, %v379
    %v480 = vunpack.c.l.b16 %v271
    %v481 = vunpack.c.h.b16 %v271
    %v482 = vunpack.c.l.b16 %v272
    %v483 = vunpack.c.l.b16 %v273
    %v484 = vunpack.c.h.b16 %v273
    %v485 = vunpack.c.l.b16 %v274
    %v486 = vunpack.c.l.b16 %v275
    %v487 = vunpack.c.h.b16 %v275
    %v488 = vunpack.c.l.b16 %v276
    %v489 = vunpack.c.l.b16 %v277
    %v490 = vunpack.c.h.b16 %v277
    %v491 = vunpack.c.l.b16 %v278
    %v492 = vunpack.c.l.b16 %v279
    %v493 = vunpack.c.h.b16 %v279
    %v494 = vunpack.c.l.b16 %v280
    %v495 = vunpack.c.l.b16 %v281
    %v496 = vunpack.c.h.b16 %v281
    %v497 = vunpack.c.l.b16 %v282
    %v498 = vunpack.c.l.b16 %v283
    %v499 = vunpack.c.h.b16 %v283
    %v500 = vunpack.c.l.b16 %v284
    %v501 = vunpack.c.l.b16 %v285
    %v502 = vunpack.c.h.b16 %v285
    %v503 = vunpack.c.l.b16 %v286
    %v504 = vunpack.c.l.b16 %v287
    %v505 = vunpack.c.h.b16 %v287
    %v506 = vunpack.c.l.b16 %v288
    %v507 = vunpack.c.l.b16 %v289
    %v508 = vunpack.c.h.b16 %v289
    %v509 = vunpack.c.l.b16 %v290
    %v510 = vunpack.c.l.b16 %v291
    %v511 = vunpack.c.h.b16 %v291
    %v512 = vunpack.c.l.b16 %v292
    %v513 = vunpack.c.l.b16 %v293
    %v514 = vunpack.c.h.b16 %v293
    %v515 = vunpack.c.l.b16 %v294
    %v516 = vunpack.c.l.b16 %v295
    %v517 = vunpack.c.h.b16 %v295
    %v518 = vunpack.c.l.b16 %v296
    %v519 = vunpack.c.l.b16 %v297
    %v520 = vunpack.c.h.b16 %v297
    %v521 = vunpack.c.l.b16 %v298
    %v522 = vunpack.c.l.b16 %v299
    %v523 = vunpack.c.h.b16 %v299
    %v524 = vunpack.c.l.b16 %v300
    %v525 = vunpack.c.l.b16 %v301
    %v526 = vunpack.c.h.b16 %v301
    %v527 = vunpack.c.l.b16 %v302
    %v528 = vunpack.c.l.b16 %v303
    %v529 = vunpack.c.h.b16 %v303
    %v530 = vunpack.c.l.b16 %v304
    %v531 = vunpack.c.l.b16 %v305
    %v532 = vunpack.c.h.b16 %v305
    %v533 = vunpack.c.l.b16 %v306
    %v534 = vunpack.c.l.b16 %v307
    %v535 = vunpack.c.h.b16 %v307
    %v536 = vunpack.c.l.b16 %v308
    %v537 = vunpack.c.l.b16 %v309
    %v538 = vunpack.c.h.b16 %v309
    %v539 = vunpack.c.l.b16 %v310
    %v540 = vunpack.c.l.b16 %v311
    %v541 = vunpack.c.h.b16 %v311
    %v542 = vunpack.c.l.b16 %v312
    %v543 = vunpack.c.l.b16 %v313
    %v544 = vunpack.c.h.b16 %v313
    %v545 = vunpack.c.l.b16 %v314
    %v546 = vunpack.c.l.b16 %v315
    %v547 = vunpack.c.h.b16 %v315
    %v548 = vunpack.c.l.b16 %v316
    %v549 = vunpack.c.l.b16 %v317
    %v550 = vunpack.c.h.b16 %v317
    %v551 = vunpack.c.l.b16 %v318
    %v552 = vunpack.c.l.b16 %v319
    %v553 = vunpack.c.h.b16 %v319
    %v554 = vunpack.c.l.b16 %v320
    %v555 = vunpack.c.l.b16 %v321
    %v556 = vunpack.c.h.b16 %v321
    %v557 = vunpack.c.l.b16 %v322
    %v558 = vunpack.c.l.b16 %v323
    %v559 = vunpack.c.h.b16 %v323
    %v560 = vunpack.c.l.b16 %v324
    %v561 = vunpack.c.l.b16 %v325
    %v562 = vunpack.c.h.b16 %v325
    %v563 = vunpack.c.l.b16 %v326
    %v564 = vunpack.c.l.b16 %v327
    %v565 = vunpack.c.h.b16 %v327
    %v566 = vunpack.c.l.b16 %v328
    %v567 = vunpack.c.l.b16 %v329
    %v568 = vunpack.c.h.b16 %v329
    %v569 = vunpack.c.l.b16 %v330
    %v570 = vunpack.c.l.b16 %v331
    %v571 = vunpack.c.h.b16 %v331
    %v572 = vunpack.c.l.b16 %v332
    %v573 = vunpack.c.l.b16 %v333
    %v574 = vunpack.c.h.b16 %v333
    %v575 = vunpack.c.l.b16 %v334
    %v576 = vunpack.c.l.b16 %v335
    %v577 = vunpack.c.h.b16 %v335
    %v578 = vunpack.c.l.b16 %v336
    %v579 = vunpack.c.l.b16 %v337
    %v580 = vunpack.c.h.b16 %v337
    %v581 = vunpack.c.l.b16 %v338
    %v582 = vunpack.c.l.b16 %v339
    %v583 = vunpack.c.h.b16 %v339
    %v584 = vunpack.c.l.b16 %v340
    %v585 = vunpack.c.l.b16 %v341
    %v586 = vunpack.c.h.b16 %v341
    %v587 = vunpack.c.l.b16 %v342
    %v588 = vunpack.c.l.b16 %v343
    %v589 = vunpack.c.h.b16 %v343
    %v590 = vunpack.c.l.b16 %v344
    %v591 = vunpack.c.l.b16 %v345
    %v592 = vunpack.c.h.b16 %v345
    %v593 = vunpack.c.l.b16 %v346
    %v594 = vunpack.c.l.b16 %v347
    %v595 = vunpack.c.h.b16 %v347
    %v596 = vunpack.c.l.b16 %v348
    %v597 = vunpack.c.l.b16 %v349
    %v598 = vunpack.c.h.b16 %v349
    %v599 = vunpack.c.l.b16 %v350
    %v600 = vunpack.c.l.b16 %v351
    %v601 = vunpack.c.h.b16 %v351
    %v602 = vunpack.c.l.b16 %v352
    %v603 = vunpack.c.l.b16 %v353
    %v604 = vunpack.c.h.b16 %v353
    %v605 = vunpack.c.l.b16 %v354
    %v606 = vunpack.c.l.b16 %v355
    %v607 = vunpack.c.h.b16 %v355
    %v608 = vunpack.c.l.b16 %v356
    %v609 = vunpack.c.l.b16 %v357
    %v610 = vunpack.c.h.b16 %v357
    %v611 = vunpack.c.l.b16 %v358
    %v612 = vunpack.c.l.b16 %v359
    %v613 = vunpack.c.h.b16 %v359
    %v614 = vunpack.c.l.b16 %v360
    %v615 = vunpack.c.l.b16 %v361
    %v616 = vunpack.c.h.b16 %v361
    %v617 = vunpack.c.l.b16 %v362
    %v618 = vunpack.c.l.b16 %v363
    %v619 = vunpack.c.h.b16 %v363
    %v620 = vunpack.c.l.b16 %v364
    %v621 = vunpack.c.l.b16 %v365
    %v622 = vunpack.c.h.b16 %v365
    %v623 = vunpack.c.l.b16 %v366
    %v624 = vpack.c.b16 %v483, %v480
    %v625 = vpack.c.b16 %v484, %v481
    %v626 = vpack.c.b16 %v485, %v482
    %v627 = vpack.c.b16 %v489, %v486
    %v628 = vpack.c.b16 %v490, %v487
    %v629 = vpack.c.b16 %v491, %v488
    %v630 = vpack.c.b16 %v495, %v492
    %v631 = vpack.c.b16 %v496, %v493
    %v632 = vpack.c.b16 %v497, %v494
    %v633 = vpack.c.b16 %v501, %v498
    %v634 = vpack.c.b16 %v502, %v499
    %v635 = vpack.c.b16 %v503, %v500
    %v636 = vpack.c.b16 %v507, %v504
    %v637 = vpack.c.b16 %v508, %v505
    %v638 = vpack.c.b16 %v509, %v506
    %v639 = vpack.c.b16 %v513, %v510
    %v640 = vpack.c.b16 %v514, %v511
    %v641 = vpack.c.b16 %v515, %v512
    %v642 = vpack.c.b16 %v519, %v516
    %v643 = vpack.c.b16 %v520, %v517
    %v644 = vpack.c.b16 %v521, %v518
    %v645 = vpack.c.b16 %v525, %v522
    %v646 = vpack.c.b16 %v526, %v523
    %v647 = vpack.c.b16 %v527, %v524
    %v648 = vpack.c.b16 %v531, %v528
    %v649 = vpack.c.b16 %v532, %v529
    %v650 = vpack.c.b16 %v533, %v530
    %v651 = vpack.c.b16 %v537, %v534
    %v652 = vpack.c.b16 %v538, %v535
    %v653 = vpack.c.b16 %v539, %v536
    %v654 = vpack.c.b16 %v543, %v540
    %v655 = vpack.c.b16 %v544, %v541
    %v656 = vpack.c.b16 %v545, %v542
    %v657 = vpack.c.b16 %v549, %v546
    %v658 = vpack.c.b16 %v550, %v547
    %v659 = vpack.c.b16 %v551, %v548
    %v660 = vpack.c.b16 %v555, %v552
    %v661 = vpack.c.b16 %v556, %v553
    %v662 = vpack.c.b16 %v557, %v554
    %v663 = vpack.c.b16 %v561, %v558
    %v664 = vpack.c.b16 %v562, %v559
    %v665 = vpack.c.b16 %v563, %v560
    %v666 = vpack.c.b16 %v567, %v564
    %v667 = vpack.c.b16 %v568, %v565
    %v668 = vpack.c.b16 %v569, %v566
    %v669 = vpack.c.b16 %v573, %v570
    %v670 = vpack.c.b16 %v574, %v571
    %v671 = vpack.c.b16 %v575, %v572
    %v672 = vpack.c.b16 %v579, %v576
    %v673 = vpack.c.b16 %v580, %v577
    %v674 = vpack.c.b16 %v581, %v578
    %v675 = vpack.c.b16 %v585, %v582
    %v676 = vpack.c.b16 %v586, %v583
    %v677 = vpack.c.b16 %v587, %v584
    %v678 = vpack.c.b16 %v591, %v588
    %v679 = vpack.c.b16 %v592, %v589
    %v680 = vpack.c.b16 %v593, %v590
    %v681 = vpack.c.b16 %v597, %v594
    %v682 = vpack.c.b16 %v598, %v595
    %v683 = vpack.c.b16 %v599, %v596
    %v684 = vpack.c.b16 %v603, %v600
    %v685 = vpack.c.b16 %v604, %v601
    %v686 = vpack.c.b16 %v605, %v602
    %v687 = vpack.c.b16 %v609, %v606
    %v688 = vpack.c.b16 %v610, %v607
    %v689 = vpack.c.b16 %v611, %v608
    %v690 = vpack.c.b16 %v615, %v612
    %v691 = vpack.c.b16 %v616, %v613
    %v692 = vpack.c.b16 %v617, %v614
    %v693 = vpack.c.b16 %v621, %v618
    %v694 = vpack.c.b16 %v622, %v619
    %v695 = vpack.c.b16 %v623, %v620
    %768 = vmatprep.subr.bf16.mxu0 %v625
    %769 = vmatpush1.bf16.msra.mxu0 %v624
    %770 = vmatprep.subr.bf16.mxu0 %v628
    %771 = vmatpush1.bf16.msra.mxu0 %v627
    %772 = vmatprep.subr.bf16.mxu0 %v631
    %773 = vmatpush1.bf16.msra.mxu0 %v630
    %774 = vmatprep.subr.bf16.mxu0 %v634
    %775 = vmatpush1.bf16.msra.mxu0 %v633
    %776 = vmatprep.subr.bf16.mxu0 %v637
    %777 = vmatpush1.bf16.msra.mxu0 %v636
    %778 = vmatprep.subr.bf16.mxu0 %v640
    %779 = vmatpush1.bf16.msra.mxu0 %v639
    %780 = vmatprep.subr.bf16.mxu0 %v643
    %781 = vmatpush1.bf16.msra.mxu0 %v642
    %782 = vmatprep.subr.bf16.mxu0 %v646
    %783 = vmatpush1.bf16.msra.mxu0 %v645
    %784 = vmatprep.subr.bf16.mxu0 %v649
    %785 = vmatpush1.bf16.msra.mxu0 %v648
    %786 = vmatprep.subr.bf16.mxu0 %v652
    %787 = vmatpush1.bf16.msra.mxu0 %v651
    %788 = vmatprep.subr.bf16.mxu0 %v655
    %789 = vmatpush1.bf16.msra.mxu0 %v654
    %790 = vmatprep.subr.bf16.mxu0 %v658
    %791 = vmatpush1.bf16.msra.mxu0 %v657
    %792 = vmatprep.subr.bf16.mxu0 %v661
    %793 = vmatpush1.bf16.msra.mxu0 %v660
    %794 = vmatprep.subr.bf16.mxu0 %v664
    %795 = vmatpush1.bf16.msra.mxu0 %v663
    %796 = vmatprep.subr.bf16.mxu0 %v667
    %797 = vmatpush1.bf16.msra.mxu0 %v666
    %798 = vmatprep.subr.bf16.mxu0 %v670
    %799 = vmatpush1.bf16.msra.mxu0 %v669
    %800 = vmatprep.mubr.bf16.mxu0 %v266
    %801 = vmatmul.mubr.bf16.gmra.mrb[0].mxu0 %v265
    %v802 = vpop.f32.mrb[0].mxu0
    %v803 = vadd.f32 %v372, %v802
    %v804 = vpop.f32.mrb[0].mxu0
    %v805 = vadd.f32 %v376, %v804
    %v806 = vpop.f32.mrb[0].mxu0
    %v807 = vadd.f32 %v372, %v806
    %v808 = vpop.f32.mrb[0].mxu0
    %v809 = vadd.f32 %v376, %v808
    %810 = vmatprep.mubr.bf16.mxu0 %v269
    %811 = vmatmul.mubr.bf16.gmra.mrb[0].mxu0 %v268
    %v812 = vpop.f32.mrb[0].mxu0
    %v813 = vadd.f32 %v372, %v812
    %v814 = vpop.f32.mrb[0].mxu0
    %v815 = vadd.f32 %v376, %v814
    %v816 = vpop.f32.mrb[0].mxu0
    %v817 = vadd.f32 %v372, %v816
    %v818 = vpop.f32.mrb[0].mxu0
    %v819 = vadd.f32 %v376, %v818
    %820 = vdwg.mxu0
    %821 = vmatprep.subr.bf16.mxu0 %v673
    %822 = vmatpush1.bf16.msra.mxu0 %v672
    %823 = vmatprep.subr.bf16.mxu0 %v676
    %824 = vmatpush1.bf16.msra.mxu0 %v675
    %825 = vmatprep.subr.bf16.mxu0 %v679
    %826 = vmatpush1.bf16.msra.mxu0 %v678
    %827 = vmatprep.subr.bf16.mxu0 %v682
    %828 = vmatpush1.bf16.msra.mxu0 %v681
    %829 = vmatprep.subr.bf16.mxu0 %v685
    %830 = vmatpush1.bf16.msra.mxu0 %v684
    %831 = vmatprep.subr.bf16.mxu0 %v688
    %832 = vmatpush1.bf16.msra.mxu0 %v687
    %833 = vmatprep.subr.bf16.mxu0 %v691
    %834 = vmatpush1.bf16.msra.mxu0 %v690
    %835 = vmatprep.subr.bf16.mxu0 %v694
    %836 = vmatpush1.bf16.msra.mxu0 %v693
    %837 = vmatprep.subr.bf16.mxu0 0
    %838 = vmatpush1.bf16.msra.mxu0 0
    %839 = vmatprep.subr.bf16.mxu0 0
    %840 = vmatpush1.bf16.msra.mxu0 0
    %841 = vmatprep.subr.bf16.mxu0 0
    %842 = vmatpush1.bf16.msra.mxu0 0
    %843 = vmatprep.subr.bf16.mxu0 0
    %844 = vmatpush1.bf16.msra.mxu0 0
    %845 = vmatprep.subr.bf16.mxu0 0
    %846 = vmatpush1.bf16.msra.mxu0 0
    %847 = vmatprep.subr.bf16.mxu0 0
    %848 = vmatpush1.bf16.msra.mxu0 0
    %849 = vmatprep.subr.bf16.mxu0 0
    %850 = vmatpush1.bf16.msra.mxu0 0
    %851 = vmatprep.subr.bf16.mxu0 0
    %852 = vmatpush1.bf16.msra.mxu0 0
    %853 = vmatprep.mubr.bf16.mxu0 0
    %854 = vmatmul.mubr.bf16.gmra.mrb[0].mxu0 %v267
    %v855 = vpop.f32.mrb[0].mxu0
    %v856 = vadd.f32 %v803, %v855
    %v857 = vpop.f32.mrb[0].mxu0
    %v858 = vadd.f32 %v805, %v857
    %v859 = vpop.f32.mrb[0].mxu0
    %v860 = vadd.f32 %v807, %v859
    %v861 = vpop.f32.mrb[0].mxu0
    %v862 = vadd.f32 %v809, %v861
    %863 = vmatprep.mubr.bf16.mxu0 0
    %864 = vmatmul.mubr.bf16.gmra.mrb[0].mxu0 %v270
    %v865 = vpop.f32.mrb[0].mxu0
    %v866 = vadd.f32 %v813, %v865
    %v867 = vpop.f32.mrb[0].mxu0
    %v868 = vadd.f32 %v815, %v867
    %v869 = vpop.f32.mrb[0].mxu0
    %v870 = vadd.f32 %v817, %v869
    %v871 = vpop.f32.mrb[0].mxu0
    %v872 = vadd.f32 %v819, %v871
    %873 = vdwg.mxu0
    %874 = vmatprep.subr.bf16.mxu0 0
    %875 = vmatpush1.bf16.msra.mxu0 %v626
    %876 = vmatprep.subr.bf16.mxu0 0
    %877 = vmatpush1.bf16.msra.mxu0 %v629
    %878 = vmatprep.subr.bf16.mxu0 0
    %879 = vmatpush1.bf16.msra.mxu0 %v632
    %880 = vmatprep.subr.bf16.mxu0 0
    %881 = vmatpush1.bf16.msra.mxu0 %v635
    %882 = vmatprep.subr.bf16.mxu0 0
    %883 = vmatpush1.bf16.msra.mxu0 %v638
    %884 = vmatprep.subr.bf16.mxu0 0
    %885 = vmatpush1.bf16.msra.mxu0 %v641
    %886 = vmatprep.subr.bf16.mxu0 0
    %887 = vmatpush1.bf16.msra.mxu0 %v644
    %888 = vmatprep.subr.bf16.mxu0 0
    %889 = vmatpush1.bf16.msra.mxu0 %v647
    %890 = vmatprep.subr.bf16.mxu0 0
    %891 = vmatpush1.bf16.msra.mxu0 %v650
    %892 = vmatprep.subr.bf16.mxu0 0
    %893 = vmatpush1.bf16.msra.mxu0 %v653
    %894 = vmatprep.subr.bf16.mxu0 0
    %895 = vmatpush1.bf16.msra.mxu0 %v656
    %896 = vmatprep.subr.bf16.mxu0 0
    %897 = vmatpush1.bf16.msra.mxu0 %v659
    %898 = vmatprep.subr.bf16.mxu0 0
    %899 = vmatpush1.bf16.msra.mxu0 %v662
    %900 = vmatprep.subr.bf16.mxu0 0
    %901 = vmatpush1.bf16.msra.mxu0 %v665
    %902 = vmatprep.subr.bf16.mxu0 0
    %903 = vmatpush1.bf16.msra.mxu0 %v668
    %904 = vmatprep.subr.bf16.mxu0 0
    %905 = vmatpush1.bf16.msra.mxu0 %v671
    %906 = vmatprep.mubr.bf16.mxu0 %v266
    %907 = vmatmul.mubr.bf16.gmra.mrb[0].mxu0 %v265
    %v908 = vpop.f32.mrb[0].mxu0
    %v909 = vadd.f32 %v380, %v908
    %v910 = vpop.f32.mrb[0].mxu0
    %v911 = vpop.f32.mrb[0].mxu0
    %v912 = vadd.f32 %v380, %v911
    %v913 = vpop.f32.mrb[0].mxu0
    %914 = vmatprep.mubr.bf16.mxu0 %v269
    %915 = vmatmul.mubr.bf16.gmra.mrb[0].mxu0 %v268
    %v916 = vpop.f32.mrb[0].mxu0
    %v917 = vadd.f32 %v380, %v916
    %v918 = vpop.f32.mrb[0].mxu0
    %v919 = vpop.f32.mrb[0].mxu0
    %v920 = vadd.f32 %v380, %v919
    %v921 = vpop.f32.mrb[0].mxu0
    %922 = vdwg.mxu0
    %923 = vmatprep.subr.bf16.mxu0 0
    %924 = vmatpush1.bf16.msra.mxu0 %v674
    %925 = vmatprep.subr.bf16.mxu0 0
    %926 = vmatpush1.bf16.msra.mxu0 %v677
    %927 = vmatprep.subr.bf16.mxu0 0
    %928 = vmatpush1.bf16.msra.mxu0 %v680
    %929 = vmatprep.subr.bf16.mxu0 0
    %930 = vmatpush1.bf16.msra.mxu0 %v683
    %931 = vmatprep.subr.bf16.mxu0 0
    %932 = vmatpush1.bf16.msra.mxu0 %v686
    %933 = vmatprep.subr.bf16.mxu0 0
    %934 = vmatpush1.bf16.msra.mxu0 %v689
    %935 = vmatprep.subr.bf16.mxu0 0
    %936 = vmatpush1.bf16.msra.mxu0 %v692
    %937 = vmatprep.subr.bf16.mxu0 0
    %938 = vmatpush1.bf16.msra.mxu0 %v695
    %939 = vmatprep.subr.bf16.mxu0 0
    %940 = vmatpush1.bf16.msra.mxu0 0
    %941 = vmatprep.subr.bf16.mxu0 0
    %942 = vmatpush1.bf16.msra.mxu0 0
    %943 = vmatprep.subr.bf16.mxu0 0
    %944 = vmatpush1.bf16.msra.mxu0 0
    %945 = vmatprep.subr.bf16.mxu0 0
    %946 = vmatpush1.bf16.msra.mxu0 0
    %947 = vmatprep.subr.bf16.mxu0 0
    %948 = vmatpush1.bf16.msra.mxu0 0
    %949 = vmatprep.subr.bf16.mxu0 0
    %950 = vmatpush1.bf16.msra.mxu0 0
    %951 = vmatprep.subr.bf16.mxu0 0
    %952 = vmatpush1.bf16.msra.mxu0 0
    %953 = vmatprep.subr.bf16.mxu0 0
    %954 = vmatpush1.bf16.msra.mxu0 0
    %955 = vmatprep.mubr.bf16.mxu0 0
    %956 = vmatmul.mubr.bf16.gmra.mrb[0].mxu0 %v267
    %v957 = vpop.f32.mrb[0].mxu0
    %v958 = vadd.f32 %v909, %v957
    %v959 = vpop.f32.mrb[0].mxu0
    %v960 = vpop.f32.mrb[0].mxu0
    %v961 = vadd.f32 %v912, %v960
    %v962 = vpop.f32.mrb[0].mxu0
    %963 = vmatprep.mubr.bf16.mxu0 0
    %964 = vmatmul.mubr.bf16.gmra.mrb[0].mxu0 %v270
    %v965 = vpop.f32.mrb[0].mxu0
    %v966 = vadd.f32 %v917, %v965
    %v967 = vpop.f32.mrb[0].mxu0
    %v968 = vpop.f32.mrb[0].mxu0
    %v969 = vadd.f32 %v920, %v968
    %v970 = vpop.f32.mrb[0].mxu0
    %971 = vdwg.mxu0
    %v972 = vmax.f32 %v856, 0.0
    %v973 = vmax.f32 %v858, 0.0
    %v974 = vmax.f32 %v958, 0.0
    %v975 = vmax.f32 %v860, 0.0
    %v976 = vmax.f32 %v862, 0.0
    %v977 = vmax.f32 %v961, 0.0
    %v978 = vmax.f32 %v866, 0.0
    %v979 = vmax.f32 %v868, 0.0
    %v980 = vmax.f32 %v966, 0.0
    %v981 = vmax.f32 %v870, 0.0
    %v982 = vmax.f32 %v872, 0.0
    %v983 = vmax.f32 %v969, 0.0
    %v984 = vpack.c.bf16 %v976, %v973
    %v985 = vpack.c.bf16 %v982, %v979
    %v986 = vld [vmem:[%s5] sm:$0xf]
    %v987 = vld [vmem:[%s5 + $0x4] sm:$0xf]
    %v988 = vld [vmem:[%s5 + $0x8] sm:$0xf]
    %v989 = vld [vmem:[%s5 + $0xc] sm:$0xf]
    %v990 = vld [vmem:[%s5 + $0x10] sm:$0xf]
    %v991 = vld [vmem:[%s5 + $0x14] sm:$0xf]
    %v992 = vld [vmem:[%s5 + $0x18] sm:$0xf]
    %v993 = vld [vmem:[%s5 + $0x1c] sm:$0xf]
    %v994 = vld [vmem:[%s5 + $0x20] sm:$0xf]
    %v995 = vld [vmem:[%s5 + $0x24] sm:$0xf]
    %v996 = vld [vmem:[%s5 + $0x28] sm:$0xf]
    %v997 = vld [vmem:[%s5 + $0x2c] sm:$0xf]
    %v998 = vld [vmem:[%s5 + $0x30] sm:$0xf]
    %v999 = vld [vmem:[%s5 + $0x34] sm:$0xf]
    %v1000 = vld [vmem:[%s5 + $0x38] sm:$0xf]
    %v1001 = vld [vmem:[%s5 + $0x3c] sm:$0xf]
    %v1002 = vld [vmem:[%s6] sm:$0x1]
    %v1004 = vlaneseq
    %v1005 = vshrl.u32 %v1004, 7
    %v1006 = vsub.s32 0, %v1005
    %v1007 = vrot.slane %v1002, %v1006
    %v1025 = vunpack.c.l.b16 %v986
    %v1026 = vunpack.c.l.b16 %v987
    %v1027 = vunpack.c.l.b16 %v988
    %v1028 = vunpack.c.l.b16 %v989
    %v1029 = vunpack.c.l.b16 %v990
    %v1030 = vunpack.c.l.b16 %v991
    %v1031 = vunpack.c.l.b16 %v992
    %v1032 = vunpack.c.l.b16 %v993
    %v1033 = vunpack.c.l.b16 %v994
    %v1034 = vunpack.c.l.b16 %v995
    %v1035 = vunpack.c.l.b16 %v996
    %v1036 = vunpack.c.l.b16 %v997
    %v1037 = vunpack.c.l.b16 %v998
    %v1038 = vunpack.c.l.b16 %v999
    %v1039 = vunpack.c.l.b16 %v1000
    %v1040 = vunpack.c.l.b16 %v1001
    %v1041 = vpack.c.b16 %v1026, %v1025
    %v1042 = vpack.c.b16 %v1028, %v1027
    %v1043 = vpack.c.b16 %v1030, %v1029
    %v1044 = vpack.c.b16 %v1032, %v1031
    %v1045 = vpack.c.b16 %v1034, %v1033
    %v1046 = vpack.c.b16 %v1036, %v1035
    %v1047 = vpack.c.b16 %v1038, %v1037
    %v1048 = vpack.c.b16 %v1040, %v1039
    %1057 = vmatprep.subr.bf16.mxu0 0
    %1058 = vmatpush1.bf16.msra.mxu0 %v1041
    %1059 = vmatprep.subr.bf16.mxu0 0
    %1060 = vmatpush1.bf16.msra.mxu0 %v1042
    %1061 = vmatprep.subr.bf16.mxu0 0
    %1062 = vmatpush1.bf16.msra.mxu0 %v1043
    %1063 = vmatprep.subr.bf16.mxu0 0
    %1064 = vmatpush1.bf16.msra.mxu0 %v1044
    %1065 = vmatprep.subr.bf16.mxu0 0
    %1066 = vmatpush1.bf16.msra.mxu0 %v1045
    %1067 = vmatprep.subr.bf16.mxu0 0
    %1068 = vmatpush1.bf16.msra.mxu0 %v1046
    %1069 = vmatprep.subr.bf16.mxu0 0
    %1070 = vmatpush1.bf16.msra.mxu0 %v1047
    %1071 = vmatprep.subr.bf16.mxu0 0
    %1072 = vmatpush1.bf16.msra.mxu0 %v1048
    %1073 = vmatprep.subr.bf16.mxu0 0
    %1074 = vmatpush1.bf16.msra.mxu0 0
    %1075 = vmatprep.subr.bf16.mxu0 0
    %1076 = vmatpush1.bf16.msra.mxu0 0
    %1077 = vmatprep.subr.bf16.mxu0 0
    %1078 = vmatpush1.bf16.msra.mxu0 0
    %1079 = vmatprep.subr.bf16.mxu0 0
    %1080 = vmatpush1.bf16.msra.mxu0 0
    %1081 = vmatprep.subr.bf16.mxu0 0
    %1082 = vmatpush1.bf16.msra.mxu0 0
    %1083 = vmatprep.subr.bf16.mxu0 0
    %1084 = vmatpush1.bf16.msra.mxu0 0
    %1085 = vmatprep.subr.bf16.mxu0 0
    %1086 = vmatpush1.bf16.msra.mxu0 0
    %1087 = vmatprep.subr.bf16.mxu0 0
    %1088 = vmatpush1.bf16.msra.mxu0 0
    %1089 = vmatprep.mubr.bf16.mxu0 0
    %1090 = vmatmul.mubr.bf16.gmra.mrb[0].mxu0 %v984
    %v1091 = vpop.f32.mrb[0].mxu0
    %v1092 = vadd.f32 %v1007, %v1091
    %v1093 = vpop.f32.mrb[0].mxu0
    %v1094 = vpop.f32.mrb[0].mxu0
    %v1095 = vadd.f32 %v1007, %v1094
    %v1096 = vpop.f32.mrb[0].mxu0
    %1097 = vmatprep.mubr.bf16.mxu0 0
    %1098 = vmatmul.mubr.bf16.gmra.mrb[0].mxu0 %v985
    %v1099 = vpop.f32.mrb[0].mxu0
    %v1100 = vadd.f32 %v1007, %v1099
    %v1101 = vpop.f32.mrb[0].mxu0
    %v1102 = vpop.f32.mrb[0].mxu0
    %v1103 = vadd.f32 %v1007, %v1102
    %v1104 = vpop.f32.mrb[0].mxu0
    %1105 = vdwg.mxu0
    %v1106 = vmax.f32 %v1092, 0.0
    %v1107 = vmax.f32 %v1095, 0.0
    %v1108 = vmax.f32 %v1100, 0.0
    %v1109 = vmax.f32 %v1103, 0.0
    %1110 = vst [vmem:[%s7] sm:$0xff] %v972
    %1111 = vst [vmem:[%s7 + $0x18] sm:$0xff] %v975
    %1112 = vst [vmem:[%s7 + $0x30] sm:$0xff] %v978
    %1113 = vst [vmem:[%s7 + $0x48] sm:$0xff] %v981
    %1114 = vst [vmem:[%s7 + $0x8] sm:$0xff] %v1106
    %1115 = vst [vmem:[%s7 + $0x20] sm:$0xff] %v1107
    %1116 = vst [vmem:[%s7 + $0x38] sm:$0xff] %v1108
    %1117 = vst [vmem:[%s7 + $0x50] sm:$0xff] %v1109
    %1118 = vst [vmem:[%s7 + $0x10] sm:$0xff] %v974
    %1119 = vst [vmem:[%s7 + $0x28] sm:$0xff] %v977
    %1120 = vst [vmem:[%s7 + $0x40] sm:$0xff] %v980
    %1121 = vst [vmem:[%s7 + $0x58] sm:$0xff] %v983
    // Predicated region
    $region34: #{inception4_forward.1} parent=1 // pred_check
      _
    $region35: #{inception4_forward.1} parent=1 // pred_check_branch
      %1123 = sbr.rel (0) target = $region37
    $region36: #{inception4_forward.1} parent=1 // pred_region
      _
    $region37: #{inception4_forward.1} parent=1 // pred_fallthru
      _
    // Predicated region
    $region38: #{inception4_forward.1} parent=1 // pred_check
      _
    $region39: #{inception4_forward.1} parent=1 // pred_check_branch
      %1125 = sbr.rel (0) target = $region41
    $region40: #{inception4_forward.1} parent=1 // pred_region
      _
    $region41: #{inception4_forward.1} parent=1 // pred_fallthru
      _
    %1126 = vsyncpa [#allocation3], 1

</llo_original>
